<compile_context>
chip_gen: v5e
topology: v5e:2x2
jax: 0.10.0
libtpu: 0.0.40
codegen_flags: <defaults>
</compile_context>

<pallas_src>
import math

import jax
import jax.numpy as jnp
import numpy as np
from jax.experimental import pallas as pl
from jax.experimental.pallas import tpu as pltpu

LANE = 128
SUBLANE = 8


def _round_up(x, m):
    return ((x + m - 1) // m) * m


# ----------------------------------------------------------------------------- kernel
def encoder_gru_kernel(emb_ref, h0_ref, wih_ref, whh_ref, bih_ref, bhh_ref,
                       out_ref, h_ref):
    """One GRU time step per grid iteration; hidden state carried in h_ref (VMEM-resident)."""
    t = pl.program_id(0)
    Hp = h0_ref.shape[1]

    @pl.when(t == 0)
    def _():
        h_ref[...] = h0_ref[...]

    x = emb_ref[0]          # [Bp, E]
    h = h_ref[...]          # [Bp, Hp]

    # Two fused matmuls producing all three gates (PyTorch gate order r, z, n).
    gi = jnp.dot(x, wih_ref[...], preferred_element_type=jnp.float32) + bih_ref[...]   # [Bp, 3Hp]
    gh = jnp.dot(h, whh_ref[...], preferred_element_type=jnp.float32) + bhh_ref[...]   # [Bp, 3Hp]

    r = jax.nn.sigmoid(gi[:, 0 * Hp:1 * Hp] + gh[:, 0 * Hp:1 * Hp])
    z = jax.nn.sigmoid(gi[:, 1 * Hp:2 * Hp] + gh[:, 1 * Hp:2 * Hp])
    n = jnp.tanh(gi[:, 2 * Hp:3 * Hp] + r * gh[:, 2 * Hp:3 * Hp])
    h_new = (1.0 - z) * n + z * h

    h_ref[...] = h_new          # carry: stays resident in VMEM, written to HBM once at the end
    out_ref[0] = h_new          # per-step output, lane-dense [Bp, Hp]


# ----------------------------------------------------------------------------- wrapper
def encoder_forward(packed, tokens):
    """tokens: [S, B] int32 -> (output [S, B, H], hidden [1, B, H]), like torch.nn.GRU."""
    S, B = tokens.shape
    E = packed["emb_table"].shape[1]
    H, Hp, Bp = packed["H"], packed["Hp"], packed["Bp"]

    # Embedding lookup (data-dependent row gather) stays in the wrapper as glue.
    # TODO(synk): dropout is identity (eval-mode semantics); training-mode dropout not implemented.
    emb = packed["emb_table"][tokens]                            # [S, B, E]
    emb_p = jnp.zeros((S, Bp, E), jnp.float32).at[:, :B, :].set(emb)

    h0_p = jnp.zeros((Bp, Hp), jnp.float32)                      # PyTorch GRU default initial hidden

    out_p, h_p = pl.pallas_call(
        encoder_gru_kernel,
        grid=(S,),
        in_specs=[
            pl.BlockSpec((1, Bp, E), lambda t: (t, 0, 0)),       # per-step embedded input
            pl.BlockSpec((Bp, Hp), lambda t: (0, 0)),            # initial hidden (resident)
            pl.BlockSpec((E, 3 * Hp), lambda t: (0, 0)),         # w_ih^T   (resident)
            pl.BlockSpec((Hp, 3 * Hp), lambda t: (0, 0)),        # w_hh^T   (resident)
            pl.BlockSpec((1, 3 * Hp), lambda t: (0, 0)),         # b_ih     (resident)
            pl.BlockSpec((1, 3 * Hp), lambda t: (0, 0)),         # b_hh     (resident)
        ],
        out_specs=[
            pl.BlockSpec((1, Bp, Hp), lambda t: (t, 0, 0)),      # outputs, lane-dense
            pl.BlockSpec((Bp, Hp), lambda t: (0, 0)),            # final hidden / recurrent carry
        ],
        out_shape=[
            jax.ShapeDtypeStruct((S, Bp, Hp), jnp.float32),
            jax.ShapeDtypeStruct((Bp, Hp), jnp.float32),
        ],
        compiler_params=pltpu.CompilerParams(
            dimension_semantics=("arbitrary",),                  # sequential recurrence over time
            vmem_limit_bytes=32 * 1024 * 1024,
        ),
    )(emb_p, h0_p, packed["w_ih_t"], packed["w_hh_t"], packed["b_ih"], packed["b_hh"])

    output = out_p[:, :B, :H]          # [S, B, H]
    hidden = h_p[:B, :H][None]         # [1, B, H]
    return output, hidden


# ----------------------------------------------------------------------------- params
def init_params(key, vocab, emb_dim, hidden_dim, pad_token, batch):
    V, E, H = vocab, emb_dim, hidden_dim
    Hp = _round_up(H, LANE)
    Bp = _round_up(max(batch, SUBLANE), SUBLANE)
    s = 1.0 / math.sqrt(H)
    ks = jax.random.split(key, 5)

    def u(k, shape):
        return jax.random.uniform(k, shape, jnp.float32, minval=-s, maxval=s)

    raw = {
        "emb_table": jax.random.normal(ks[0], (V, E), jnp.float32).at[pad_token].set(0.0),
        "w_ih": u(ks[1], (3 * H, E)),
        "w_hh": u(ks[2], (3 * H, H)),
        "b_ih": u(ks[3], (3 * H,)),
        "b_hh": u(ks[4], (3 * H,)),
    }

    # Pack: transpose to [in, out]; pad the hidden/gate dims to lane multiples with zeros
    # (exact algebra: zero columns/rows contribute 0, sigmoid/tanh junk only lands in padding).
    w_ih_t = jnp.zeros((E, 3 * Hp), jnp.float32)
    w_hh_t = jnp.zeros((Hp, 3 * Hp), jnp.float32)
    b_ih = jnp.zeros((1, 3 * Hp), jnp.float32)
    b_hh = jnp.zeros((1, 3 * Hp), jnp.float32)
    for g in range(3):
        w_ih_t = w_ih_t.at[:, g * Hp:g * Hp + H].set(raw["w_ih"][g * H:(g + 1) * H, :].T)
        w_hh_t = w_hh_t.at[:H, g * Hp:g * Hp + H].set(raw["w_hh"][g * H:(g + 1) * H, :].T)
        b_ih = b_ih.at[0, g * Hp:g * Hp + H].set(raw["b_ih"][g * H:(g + 1) * H])
        b_hh = b_hh.at[0, g * Hp:g * Hp + H].set(raw["b_hh"][g * H:(g + 1) * H])

    packed = {
        "emb_table": raw["emb_table"],
        "w_ih_t": w_ih_t, "w_hh_t": w_hh_t, "b_ih": b_ih, "b_hh": b_hh,
        "H": H, "Hp": Hp, "Bp": Bp,
    }
    return raw, packed


# ----------------------------------------------------------------------------- pure-JAX reference
def encoder_reference(raw, tokens):
    H = raw["w_hh"].shape[1]
    emb = raw["emb_table"][tokens]                       # [S, B, E]
    B = tokens.shape[1]
    h = jnp.zeros((B, H), jnp.float32)

    def step(h, x):
        gi = x @ raw["w_ih"].T + raw["b_ih"]
        gh = h @ raw["w_hh"].T + raw["b_hh"]
        r = jax.nn.sigmoid(gi[:, :H] + gh[:, :H])
        z = jax.nn.sigmoid(gi[:, H:2 * H] + gh[:, H:2 * H])
        n = jnp.tanh(gi[:, 2 * H:] + r * gh[:, 2 * H:])
        h_new = (1.0 - z) * n + z * h
        return h_new, h_new

    h_final, outs = jax.lax.scan(step, h, emb)
    return outs, h_final[None]


# ----------------------------------------------------------------------------- main
if __name__ == "__main__":
    VOCAB, EMB_DIM, HIDDEN_DIM = 30, 16, 20
    SRC_LEN, BATCH = 8, 2
    PAD_TOKEN = 0

    key = jax.random.PRNGKey(0)
    kp, kt = jax.random.split(key, 2)
    raw, packed = init_params(kp, VOCAB, EMB_DIM, HIDDEN_DIM, PAD_TOKEN, BATCH)

    tokens = jax.random.randint(kt, (SRC_LEN, BATCH), 0, VOCAB)   # [S, B] seq-major, like PyTorch

    output, hidden = encoder_forward(packed, tokens)
    jax.block_until_ready((output, hidden))

    ref_out, ref_hidden = encoder_reference(raw, tokens)
    np.testing.assert_allclose(np.asarray(output), np.asarray(ref_out), rtol=1e-5, atol=1e-5)
    np.testing.assert_allclose(np.asarray(hidden), np.asarray(ref_hidden), rtol=1e-5, atol=1e-5)

    print("KERNEL_OK")
</pallas_src>

<mosaic_0001>
module attributes {stable_mosaic.version = 11 : i64} {
  func.func @encoder_gru_kernel(%arg0: i32, %arg1: memref<1x8x16xf32, #tpu.memory_space<vmem>>, %arg2: memref<8x128xf32, #tpu.memory_space<vmem>>, %arg3: memref<16x384xf32, #tpu.memory_space<vmem>>, %arg4: memref<128x384xf32, #tpu.memory_space<vmem>>, %arg5: memref<1x384xf32, #tpu.memory_space<vmem>>, %arg6: memref<1x384xf32, #tpu.memory_space<vmem>>, %arg7: memref<1x8x128xf32, #tpu.memory_space<vmem>>, %arg8: memref<8x128xf32, #tpu.memory_space<vmem>>) attributes {dimension_semantics = [#tpu.dimension_semantics<arbitrary>], iteration_bounds = array<i64: 8>, scalar_prefetch = 0 : i64, scratch_operands = 0 : i64, tpu.core_type = #tpu.core_type<tc>, window_params = [{transform_indices = @transform_0, window_bounds = array<i64: 1, 8, 16>}, {pipeline_mode = #tpu.pipeline_mode<synchronous>, transform_indices = @transform_1, window_bounds = array<i64: 8, 128>}, {pipeline_mode = #tpu.pipeline_mode<synchronous>, transform_indices = @transform_2, window_bounds = array<i64: 16, 384>}, {pipeline_mode = #tpu.pipeline_mode<synchronous>, transform_indices = @transform_3, window_bounds = array<i64: 128, 384>}, {pipeline_mode = #tpu.pipeline_mode<synchronous>, transform_indices = @transform_4, window_bounds = array<i64: 1, 384>}, {pipeline_mode = #tpu.pipeline_mode<synchronous>, transform_indices = @transform_5, window_bounds = array<i64: 1, 384>}, {transform_indices = @transform_6, window_bounds = array<i64: 1, 8, 128>}, {pipeline_mode = #tpu.pipeline_mode<synchronous>, transform_indices = @transform_7, window_bounds = array<i64: 8, 128>}]} {
    %c0_i32 = arith.constant 0 : i32
    %0 = arith.cmpi eq, %arg0, %c0_i32 : i32
    %1 = arith.extui %0 : i1 to i32
    %c0_i32_0 = arith.constant 0 : i32
    %2 = arith.cmpi ne, %1, %c0_i32_0 : i32
    scf.if %2 {
      %c0_22 = arith.constant 0 : index
      %c0_23 = arith.constant 0 : index
      %46 = vector.load %arg2[%c0_22, %c0_23] : memref<8x128xf32, #tpu.memory_space<vmem>>, vector<8x128xf32>
      %c0_24 = arith.constant 0 : index
      %c0_25 = arith.constant 0 : index
      %47 = vector.load %arg8[%c0_24, %c0_25] : memref<8x128xf32, #tpu.memory_space<vmem>>, vector<8x128xf32>
      tpu.vector_store %arg8[%c0_24, %c0_25], %46 {strides = array<i32>} : memref<8x128xf32, #tpu.memory_space<vmem>>, vector<8x128xf32>,
    } else {
    }
    %c0 = arith.constant 0 : index
    %c0_1 = arith.constant 0 : index
    %c0_2 = arith.constant 0 : index
    %3 = vector.load %arg1[%c0, %c0_1, %c0_2] : memref<1x8x16xf32, #tpu.memory_space<vmem>>, vector<1x8x16xf32>
    %4 = vector.shape_cast %3 : vector<1x8x16xf32> to vector<8x16xf32>
    %c0_3 = arith.constant 0 : index
    %c0_4 = arith.constant 0 : index
    %5 = vector.load %arg8[%c0_3, %c0_4] : memref<8x128xf32, #tpu.memory_space<vmem>>, vector<8x128xf32>
    %c0_5 = arith.constant 0 : index
    %c0_6 = arith.constant 0 : index
    %6 = vector.load %arg3[%c0_5, %c0_6] : memref<16x384xf32, #tpu.memory_space<vmem>>, vector<16x384xf32>
    %cst = arith.constant dense<0.000000e+00> : vector<8x384xf32>
    %7 = tpu.matmul %4, %6, %cst {dimension_numbers = #tpu.dot_dimension_numbers<[1], [0], [0], [1], [0, 0, 1, 1], [], []>} : vector<8x16xf32>, vector<16x384xf32>, vector<8x384xf32> -> vector<8x384xf32>
    %c0_7 = arith.constant 0 : index
    %c0_8 = arith.constant 0 : index
    %8 = vector.load %arg5[%c0_7, %c0_8] : memref<1x384xf32, #tpu.memory_space<vmem>>, vector<1x384xf32>
    %9 = vector.broadcast %8 : vector<1x384xf32> to vector<8x384xf32>
    %10 = arith.addf %7, %9 : vector<8x384xf32>
    %c0_9 = arith.constant 0 : index
    %c0_10 = arith.constant 0 : index
    %11 = vector.load %arg4[%c0_9, %c0_10] : memref<128x384xf32, #tpu.memory_space<vmem>>, vector<128x384xf32>
    %cst_11 = arith.constant dense<0.000000e+00> : vector<8x384xf32>
    %12 = tpu.matmul %5, %11, %cst_11 {dimension_numbers = #tpu.dot_dimension_numbers<[1], [0], [0], [1], [0, 0, 1, 1], [], []>} : vector<8x128xf32>, vector<128x384xf32>, vector<8x384xf32> -> vector<8x384xf32>
    %c0_12 = arith.constant 0 : index
    %c0_13 = arith.constant 0 : index
    %13 = vector.load %arg6[%c0_12, %c0_13] : memref<1x384xf32, #tpu.memory_space<vmem>>, vector<1x384xf32>
    %14 = vector.broadcast %13 : vector<1x384xf32> to vector<8x384xf32>
    %15 = arith.addf %12, %14 : vector<8x384xf32>
    %16 = vector.extract_strided_slice %10 {offsets = [0, 0], sizes = [8, 128], strides = [1, 1]} : vector<8x384xf32> to vector<8x128xf32>
    %17 = vector.extract_strided_slice %15 {offsets = [0, 0], sizes = [8, 128], strides = [1, 1]} : vector<8x384xf32> to vector<8x128xf32>
    %18 = arith.addf %16, %17 : vector<8x128xf32>
    %19 = arith.negf %18 : vector<8x128xf32>
    %20 = math.exp %19 : vector<8x128xf32>
    %cst_14 = arith.constant 1.000000e+00 : f32
    %21 = vector.broadcast %cst_14 : f32 to vector<8x128xf32>
    %22 = arith.addf %21, %20 : vector<8x128xf32>
    %23 = arith.divf %21, %22 : vector<8x128xf32>
    %24 = vector.extract_strided_slice %10 {offsets = [0, 128], sizes = [8, 128], strides = [1, 1]} : vector<8x384xf32> to vector<8x128xf32>
    %25 = vector.extract_strided_slice %15 {offsets = [0, 128], sizes = [8, 128], strides = [1, 1]} : vector<8x384xf32> to vector<8x128xf32>
    %26 = arith.addf %24, %25 : vector<8x128xf32>
    %27 = arith.negf %26 : vector<8x128xf32>
    %28 = math.exp %27 : vector<8x128xf32>
    %cst_15 = arith.constant 1.000000e+00 : f32
    %29 = vector.broadcast %cst_15 : f32 to vector<8x128xf32>
    %30 = arith.addf %29, %28 : vector<8x128xf32>
    %31 = arith.divf %29, %30 : vector<8x128xf32>
    %32 = vector.extract_strided_slice %10 {offsets = [0, 256], sizes = [8, 128], strides = [1, 1]} : vector<8x384xf32> to vector<8x128xf32>
    %33 = vector.extract_strided_slice %15 {offsets = [0, 256], sizes = [8, 128], strides = [1, 1]} : vector<8x384xf32> to vector<8x128xf32>
    %34 = arith.mulf %23, %33 : vector<8x128xf32>
    %35 = arith.addf %32, %34 : vector<8x128xf32>
    %36 = math.tanh %35 : vector<8x128xf32>
    %cst_16 = arith.constant 1.000000e+00 : f32
    %37 = vector.broadcast %cst_16 : f32 to vector<8x128xf32>
    %38 = arith.subf %37, %31 : vector<8x128xf32>
    %39 = arith.mulf %38, %36 : vector<8x128xf32>
    %40 = arith.mulf %31, %5 : vector<8x128xf32>
    %41 = arith.addf %39, %40 : vector<8x128xf32>
    %c0_17 = arith.constant 0 : index
    %c0_18 = arith.constant 0 : index
    %42 = vector.load %arg8[%c0_17, %c0_18] : memref<8x128xf32, #tpu.memory_space<vmem>>, vector<8x128xf32>
    tpu.vector_store %arg8[%c0_17, %c0_18], %41 {strides = array<i32>} : memref<8x128xf32, #tpu.memory_space<vmem>>, vector<8x128xf32>,
    %c0_19 = arith.constant 0 : index
    %c0_20 = arith.constant 0 : index
    %c0_21 = arith.constant 0 : index
    %43 = vector.load %arg7[%c0_19, %c0_20, %c0_21] : memref<1x8x128xf32, #tpu.memory_space<vmem>>, vector<1x8x128xf32>
    %44 = vector.shape_cast %43 : vector<1x8x128xf32> to vector<8x128xf32>
    %45 = vector.shape_cast %41 : vector<8x128xf32> to vector<1x8x128xf32>
    tpu.vector_store %arg7[%c0_19, %c0_20, %c0_21], %45 {strides = array<i32>} : memref<1x8x128xf32, #tpu.memory_space<vmem>>, vector<1x8x128xf32>,
    return
  }
  func.func @transform_0(%arg0: i32) -> (i32, i32, i32) {
    %c0_i32 = arith.constant 0 : i32
    %c0_i32_0 = arith.constant 0 : i32
    %c0_i32_1 = arith.constant 0 : i32
    return %arg0, %c0_i32, %c0_i32_0 : i32, i32, i32
  }
  func.func @transform_1(%arg0: i32) -> (i32, i32) {
    %c0_i32 = arith.constant 0 : i32
    %c0_i32_0 = arith.constant 0 : i32
    %c0_i32_1 = arith.constant 0 : i32
    return %c0_i32, %c0_i32_0 : i32, i32
  }
  func.func @transform_2(%arg0: i32) -> (i32, i32) {
    %c0_i32 = arith.constant 0 : i32
    %c0_i32_0 = arith.constant 0 : i32
    %c0_i32_1 = arith.constant 0 : i32
    return %c0_i32, %c0_i32_0 : i32, i32
  }
  func.func @transform_3(%arg0: i32) -> (i32, i32) {
    %c0_i32 = arith.constant 0 : i32
    %c0_i32_0 = arith.constant 0 : i32
    %c0_i32_1 = arith.constant 0 : i32
    return %c0_i32, %c0_i32_0 : i32, i32
  }
  func.func @transform_4(%arg0: i32) -> (i32, i32) {
    %c0_i32 = arith.constant 0 : i32
    %c0_i32_0 = arith.constant 0 : i32
    %c0_i32_1 = arith.constant 0 : i32
    return %c0_i32, %c0_i32_0 : i32, i32
  }
  func.func @transform_5(%arg0: i32) -> (i32, i32) {
    %c0_i32 = arith.constant 0 : i32
    %c0_i32_0 = arith.constant 0 : i32
    %c0_i32_1 = arith.constant 0 : i32
    return %c0_i32, %c0_i32_0 : i32, i32
  }
  func.func @transform_6(%arg0: i32) -> (i32, i32, i32) {
    %c0_i32 = arith.constant 0 : i32
    %c0_i32_0 = arith.constant 0 : i32
    %c0_i32_1 = arith.constant 0 : i32
    return %arg0, %c0_i32, %c0_i32_0 : i32, i32, i32
  }
  func.func @transform_7(%arg0: i32) -> (i32, i32) {
    %c0_i32 = arith.constant 0 : i32
    %c0_i32_0 = arith.constant 0 : i32
    %c0_i32_1 = arith.constant 0 : i32
    return %c0_i32, %c0_i32_0 : i32, i32
  }
}

</mosaic_0001>

<llo_original>
// kernel: tpu_custom_call.1
$region0: #{tpu_custom_call.1}
  #allocation0 [shape = 'u32[]', space=smem, size = 0x4, offset = 0x4, fixed_abs, tag = 'smem constant byte address 0x4 - core index']
  #allocation1 [shape = 'u32[72,128]{1,0:T(1,128)}', space=vmem, size = 0x9000, scoped, tag = 'internal scratch']
  %s0 = inlined_call_operand.hbm [shape: f32[8,8,16], index: 0, kind: input, shape index: {}]
  %s1 = inlined_call_operand.hbm [shape: f32[8,128], index: 1, kind: input, shape index: {}]
  %s2 = inlined_call_operand.hbm [shape: f32[16,384], index: 2, kind: input, shape index: {}]
  %s3 = inlined_call_operand.hbm [shape: f32[128,384], index: 3, kind: input, shape index: {}]
  %s4 = inlined_call_operand.vmem [shape: f32[1,384], index: 4, kind: input, shape index: {}]
  %s5 = inlined_call_operand.hbm [shape: f32[1,384], index: 5, kind: input, shape index: {}]
  %s6 = inlined_call_operand.hbm [shape: f32[8,8,128], index: 6, kind: output, shape index: {0}]
  %s7 = inlined_call_operand.hbm [shape: f32[8,128], index: 7, kind: output, shape index: {1}]
  %8 = xla_tuple %s6, %s7
  %s9 = sld [smem:[#allocation0]]
  $region89: #{tpu_custom_call.1} parent=0
    _
  %s11 = ssub.s32 1, %s9
  %s12 = scalar_select 0, %s11, %s9
  $region1: #{tpu_custom_call.1} parent=0
    #allocation2 [shape = 'u8[8192]{0}', space=vmem, size = 0x2000, scoped, tag = 'input window, operand 0']
    #allocation3 [shape = 's32[2]{0}', space=sflag, size = 0x8, scoped, tag = 'scoped memory for tpu_custom_call.1']
    #allocation4 [shape = 's32[2]{0}', space=sflag, size = 0x8, scoped, tag = 'scoped memory for tpu_custom_call.1']
    #allocation5 [shape = 'u8[4096]{0}', space=vmem, size = 0x1000, scoped, tag = 'input window, operand 1, single buffered']
    #allocation6 [shape = 's32[1]{0}', space=sflag, size = 0x4, scoped, tag = 'scoped memory for tpu_custom_call.1']
    #allocation7 [shape = 'u8[24576]{0}', space=vmem, size = 0x6000, scoped, tag = 'input window, operand 2, single buffered']
    #allocation8 [shape = 'u8[196608]{0}', space=vmem, size = 0x30000, scoped, tag = 'input window, operand 3, single buffered']
    #allocation9 [shape = 's32[1]{0}', space=sflag, size = 0x4, scoped, tag = 'scoped memory for tpu_custom_call.1']
    #allocation10 [shape = 'u8[1536]{0}', space=vmem, size = 0x800, scoped, tag = 'input window, operand 5, single buffered']
    #allocation11 [shape = 'u8[8192]{0}', space=vmem, size = 0x2000, scoped, tag = 'output window, operand 0']
    #allocation12 [shape = 'u8[4096]{0}', space=vmem, size = 0x1000, scoped, tag = 'output window, operand 1, single buffered']
    #allocation13 [shape = 's32[1]{0}', space=sflag, size = 0x4, scoped, tag = 'scoped memory for tpu_custom_call.1']
    %13 = vsyncpa [#allocation3], 0
    %s14 = scalar_lea.sflag [#allocation3], 1
    %15 = vsyncpa %s14, 0
    %16 = vsyncpa [#allocation6], 0
    %17 = vsyncpa [#allocation9], 0
    %18 = vsyncpa [#allocation4], 0
    %s19 = scalar_lea.sflag [#allocation4], 1
    %20 = vsyncpa %s19, 0
    %21 = vsyncpa [#allocation13], 0
    loop: start=0, step=1, limit=10
    $region2: #{tpu_custom_call.1} parent=1 // loop_pre_header
      _
    $region3: #{tpu_custom_call.1} parent=1 // loop_header
      %s23 = sphi 0, %s27
      %p24 = scmp.ge.s32.totalorder %s23, 10
      %s33 = sphi 0, %s35
      %s36 = sphi 0, %s33
      %s37 = sphi 0, %s36
      %s53 = sphi 0, %s37
      %s57 = sphi 0, %s57
      %s59 = sphi 0, %s57
      %s60 = sphi 0, %s59
      %s74 = sphi 0, %s60
      %s78 = sphi 0, %s78
      %s80 = sphi 0, %s78
      %s81 = sphi 0, %s80
      %s95 = sphi 0, %s81
      %s99 = sphi 0, %s99
      %s101 = sphi 0, %s99
      %s102 = sphi 0, %s101
      %s116 = sphi 0, %s102
      %s120 = sphi 0, %s120
      %s122 = sphi 0, %s120
      %s123 = sphi 0, %s122
      %s137 = sphi 0, %s123
      %s141 = sphi 0, %s141
      %s143 = sphi 0, %s141
      %s144 = sphi 0, %s143
      %s158 = sphi 0, %s144
      %s164 = sphi 0, %s166
      %s167 = sphi 0, %s164
      %s168 = sphi 0, %s167
      %s184 = sphi 0, %s168
      %s188 = sphi 0, %s188
      %s190 = sphi 0, %s188
      %s191 = sphi 0, %s190
      %s205 = sphi 0, %s191
    $region4: #{tpu_custom_call.1} parent=1 // loop_header_branch
      %26 = sbr.rel (%p24) target = $region8
    $region5: #{tpu_custom_call.1} parent=1 // loop_body
      %s28 = ssub.s32 %s23, 1
      %s29 = ssub.s32 %s23, 2
      %s30 = sadd.s32 %s23, 1
      %s31 = ssub.s32 %s23, %s30
      %p32 = scmp.eq.s32.totalorder %s31, 0
      %s34 = sadd.s32 %s33, 1
      %s35 = scalar_select %p32, %s33, %s34
      %p38 = pneg %p32
      %p39 = scmp.eq.s32.totalorder %s23, 7
      %p40 = por %p38, %p39
      %p41 = scmp.ne.s32.totalorder %s33, %s36
      %p42 = scmp.eq.s32.totalorder %s23, 0
      %p43 = por %p41, %p42
      %p44 = scmp.ne.s32.totalorder %s33, %s36
      %p45 = scmp.eq.s32.totalorder %s28, 7
      %p46 = por %p44, %p45
      %p47 = scmp.ne.s32.totalorder %s36, %s37
      %p48 = scmp.eq.s32.totalorder %s28, 0
      %p49 = por %p47, %p48
      %p50 = scmp.ne.s32.totalorder %s36, %s37
      %p51 = scmp.eq.s32.totalorder %s29, 7
      %p52 = por %p50, %p51
      %p54 = scmp.ne.s32.totalorder %s37, %s53
      %p55 = scmp.eq.s32.totalorder %s29, 0
      %p56 = por %p54, %p55
      %s58 = sadd.s32 %s57, 1
      %p61 = scmp.eq.s32.totalorder %s23, 7
      %p62 = scmp.ne.s32.totalorder %s57, %s59
      %p63 = scmp.eq.s32.totalorder %s23, 0
      %p64 = por %p62, %p63
      %p65 = scmp.ne.s32.totalorder %s57, %s59
      %p66 = scmp.eq.s32.totalorder %s28, 7
      %p67 = por %p65, %p66
      %p68 = scmp.ne.s32.totalorder %s59, %s60
      %p69 = scmp.eq.s32.totalorder %s28, 0
      %p70 = por %p68, %p69
      %p71 = scmp.ne.s32.totalorder %s59, %s60
      %p72 = scmp.eq.s32.totalorder %s29, 7
      %p73 = por %p71, %p72
      %p75 = scmp.ne.s32.totalorder %s60, %s74
      %p76 = scmp.eq.s32.totalorder %s29, 0
      %p77 = por %p75, %p76
      %s79 = sadd.s32 %s78, 1
      %p82 = scmp.eq.s32.totalorder %s23, 7
      %p83 = scmp.ne.s32.totalorder %s78, %s80
      %p84 = scmp.eq.s32.totalorder %s23, 0
      %p85 = por %p83, %p84
      %p86 = scmp.ne.s32.totalorder %s78, %s80
      %p87 = scmp.eq.s32.totalorder %s28, 7
      %p88 = por %p86, %p87
      %p89 = scmp.ne.s32.totalorder %s80, %s81
      %p90 = scmp.eq.s32.totalorder %s28, 0
      %p91 = por %p89, %p90
      %p92 = scmp.ne.s32.totalorder %s80, %s81
      %p93 = scmp.eq.s32.totalorder %s29, 7
      %p94 = por %p92, %p93
      %p96 = scmp.ne.s32.totalorder %s81, %s95
      %p97 = scmp.eq.s32.totalorder %s29, 0
      %p98 = por %p96, %p97
      %s100 = sadd.s32 %s99, 1
      %p103 = scmp.eq.s32.totalorder %s23, 7
      %p104 = scmp.ne.s32.totalorder %s99, %s101
      %p105 = scmp.eq.s32.totalorder %s23, 0
      %p106 = por %p104, %p105
      %p107 = scmp.ne.s32.totalorder %s99, %s101
      %p108 = scmp.eq.s32.totalorder %s28, 7
      %p109 = por %p107, %p108
      %p110 = scmp.ne.s32.totalorder %s101, %s102
      %p111 = scmp.eq.s32.totalorder %s28, 0
      %p112 = por %p110, %p111
      %p113 = scmp.ne.s32.totalorder %s101, %s102
      %p114 = scmp.eq.s32.totalorder %s29, 7
      %p115 = por %p113, %p114
      %p117 = scmp.ne.s32.totalorder %s102, %s116
      %p118 = scmp.eq.s32.totalorder %s29, 0
      %p119 = por %p117, %p118
      %s121 = sadd.s32 %s120, 1
      %p124 = scmp.eq.s32.totalorder %s23, 7
      %p125 = scmp.ne.s32.totalorder %s120, %s122
      %p126 = scmp.eq.s32.totalorder %s23, 0
      %p127 = por %p125, %p126
      %p128 = scmp.ne.s32.totalorder %s120, %s122
      %p129 = scmp.eq.s32.totalorder %s28, 7
      %p130 = por %p128, %p129
      %p131 = scmp.ne.s32.totalorder %s122, %s123
      %p132 = scmp.eq.s32.totalorder %s28, 0
      %p133 = por %p131, %p132
      %p134 = scmp.ne.s32.totalorder %s122, %s123
      %p135 = scmp.eq.s32.totalorder %s29, 7
      %p136 = por %p134, %p135
      %p138 = scmp.ne.s32.totalorder %s123, %s137
      %p139 = scmp.eq.s32.totalorder %s29, 0
      %p140 = por %p138, %p139
      %s142 = sadd.s32 %s141, 1
      %p145 = scmp.eq.s32.totalorder %s23, 7
      %p146 = scmp.ne.s32.totalorder %s141, %s143
      %p147 = scmp.eq.s32.totalorder %s23, 0
      %p148 = por %p146, %p147
      %p149 = scmp.ne.s32.totalorder %s141, %s143
      %p150 = scmp.eq.s32.totalorder %s28, 7
      %p151 = por %p149, %p150
      %p152 = scmp.ne.s32.totalorder %s143, %s144
      %p153 = scmp.eq.s32.totalorder %s28, 0
      %p154 = por %p152, %p153
      %p155 = scmp.ne.s32.totalorder %s143, %s144
      %p156 = scmp.eq.s32.totalorder %s29, 7
      %p157 = por %p155, %p156
      %p159 = scmp.ne.s32.totalorder %s144, %s158
      %p160 = scmp.eq.s32.totalorder %s29, 0
      %p161 = por %p159, %p160
      %s162 = ssub.s32 %s23, %s30
      %p163 = scmp.eq.s32.totalorder %s162, 0
      %s165 = sadd.s32 %s164, 1
      %s166 = scalar_select %p163, %s164, %s165
      %p169 = pneg %p163
      %p170 = scmp.eq.s32.totalorder %s23, 7
      %p171 = por %p169, %p170
      %p172 = scmp.ne.s32.totalorder %s164, %s167
      %p173 = scmp.eq.s32.totalorder %s23, 0
      %p174 = por %p172, %p173
      %p175 = scmp.ne.s32.totalorder %s164, %s167
      %p176 = scmp.eq.s32.totalorder %s28, 7
      %p177 = por %p175, %p176
      %p178 = scmp.ne.s32.totalorder %s167, %s168
      %p179 = scmp.eq.s32.totalorder %s28, 0
      %p180 = por %p178, %p179
      %p181 = scmp.ne.s32.totalorder %s167, %s168
      %p182 = scmp.eq.s32.totalorder %s29, 7
      %p183 = por %p181, %p182
      %p185 = scmp.ne.s32.totalorder %s168, %s184
      %p186 = scmp.eq.s32.totalorder %s29, 0
      %p187 = por %p185, %p186
      %s189 = sadd.s32 %s188, 1
      %p192 = scmp.eq.s32.totalorder %s23, 7
      %p193 = scmp.ne.s32.totalorder %s188, %s190
      %p194 = scmp.eq.s32.totalorder %s23, 0
      %p195 = por %p193, %p194
      %p196 = scmp.ne.s32.totalorder %s188, %s190
      %p197 = scmp.eq.s32.totalorder %s28, 7
      %p198 = por %p196, %p197
      %p199 = scmp.ne.s32.totalorder %s190, %s191
      %p200 = scmp.eq.s32.totalorder %s28, 0
      %p201 = por %p199, %p200
      %p202 = scmp.ne.s32.totalorder %s190, %s191
      %p203 = scmp.eq.s32.totalorder %s29, 7
      %p204 = por %p202, %p203
      %p206 = scmp.ne.s32.totalorder %s191, %s205
      %p207 = scmp.eq.s32.totalorder %s29, 0
      %p208 = por %p206, %p207
      %p209 = scmp.le.s32.totalorder 1, %s23
      %p210 = scmp.lt.s32.totalorder %s23, 9
      %p211 = pnand %p209, %p210
      %p212 = pneg %p211
      // Predicated region
      $region9: #{tpu_custom_call.1} parent=5 // pred_check
        _
      $region10: #{tpu_custom_call.1} parent=5 // pred_check_branch
        %214 = sbr.rel (%p211) target = $region12
      $region11: #{tpu_custom_call.1} parent=5 // pred_region
        %s215 = ssub.s32 %s23, 1
        // Predicated region
        $region13: #{tpu_custom_call.1} parent=11 // pred_check
          %p216 = pneg %p70
        $region14: #{tpu_custom_call.1} parent=11 // pred_check_branch
          %218 = sbr.rel (%p216) target = $region16
        $region15: #{tpu_custom_call.1} parent=11 // pred_region
          %220 = vsyncadd [#allocation6], 0
          %s222 = sshll.u32 %s1, 4
          %s223 = int_to_ptr.hbm [resolvable:$true] %s222
          %s224 = sshll.u32 [#allocation5], 4
          %s225 = int_to_ptr.vmem [resolvable:$true] %s224
          %227 = dma.hbm_to_vmem [thread:$0]  %s223, 128, %s225, [#allocation6]
        $region16: #{tpu_custom_call.1} parent=11 // pred_fallthru
          _
        // Predicated region
        $region17: #{tpu_custom_call.1} parent=11 // pred_check
          %p228 = pneg %p91
        $region18: #{tpu_custom_call.1} parent=11 // pred_check_branch
          %230 = sbr.rel (%p228) target = $region20
        $region19: #{tpu_custom_call.1} parent=11 // pred_region
          %232 = vsyncadd [#allocation6], 0
          %s233 = sshll.u32 %s2, 4
          %s234 = int_to_ptr.hbm [resolvable:$true] %s233
          %s235 = sshll.u32 [#allocation7], 4
          %s236 = int_to_ptr.vmem [resolvable:$true] %s235
          %241 = dma.hbm_to_vmem [thread:$0]  %s234, 768, %s236, [#allocation6], 384, 384, 24
        $region20: #{tpu_custom_call.1} parent=11 // pred_fallthru
          _
        // Predicated region
        $region21: #{tpu_custom_call.1} parent=11 // pred_check
          %p242 = pneg %p112
        $region22: #{tpu_custom_call.1} parent=11 // pred_check_branch
          %244 = sbr.rel (%p242) target = $region24
        $region23: #{tpu_custom_call.1} parent=11 // pred_region
          %246 = vsyncadd [#allocation9], 0
          %s247 = sshll.u32 %s3, 4
          %s248 = int_to_ptr.hbm [resolvable:$true] %s247
          %s249 = sshll.u32 [#allocation8], 4
          %s250 = int_to_ptr.vmem [resolvable:$true] %s249
          %255 = dma.hbm_to_vmem [thread:$0]  %s248, 6144, %s250, [#allocation9], 384, 384, 24
        $region24: #{tpu_custom_call.1} parent=11 // pred_fallthru
          _
        // Predicated region
        $region25: #{tpu_custom_call.1} parent=11 // pred_check
          %p256 = pneg %p133
        $region26: #{tpu_custom_call.1} parent=11 // pred_check_branch
          %258 = sbr.rel (%p256) target = $region28
        $region27: #{tpu_custom_call.1} parent=11 // pred_region
          _
        $region28: #{tpu_custom_call.1} parent=11 // pred_fallthru
          _
        // Predicated region
        $region29: #{tpu_custom_call.1} parent=11 // pred_check
          %p259 = pneg %p154
        $region30: #{tpu_custom_call.1} parent=11 // pred_check_branch
          %261 = sbr.rel (%p259) target = $region32
        $region31: #{tpu_custom_call.1} parent=11 // pred_region
          %263 = vsyncadd [#allocation9], 0
          %s265 = sshll.u32 %s5, 4
          %s266 = int_to_ptr.hbm [resolvable:$true] %s265
          %s267 = sshll.u32 [#allocation10], 4
          %s268 = int_to_ptr.vmem [resolvable:$true] %s267
          %270 = dma.hbm_to_vmem [thread:$0]  %s266, 48, %s268, [#allocation9]
        $region32: #{tpu_custom_call.1} parent=11 // pred_fallthru
          _
      $region12: #{tpu_custom_call.1} parent=5 // pred_fallthru
        _
      %p271 = scmp.lt.s32.totalorder %s23, 8
      // Predicated region
      $region33: #{tpu_custom_call.1} parent=5 // pred_check
        %p272 = pneg %p271
      $region34: #{tpu_custom_call.1} parent=5 // pred_check_branch
        %274 = sbr.rel (%p272) target = $region36
      $region35: #{tpu_custom_call.1} parent=5 // pred_region
        // Predicated region
        $region37: #{tpu_custom_call.1} parent=35 // pred_check
          %p275 = pneg %p43
        $region38: #{tpu_custom_call.1} parent=35 // pred_check_branch
          %277 = sbr.rel (%p275) target = $region40
        $region39: #{tpu_custom_call.1} parent=35 // pred_region
          %s278 = sand.u32 %s33, 1
          %s279 = scalar_lea.sflag [#allocation3], %s278
          %s280 = sand.u32 %s33, 1
          %s281 = smul.addr %s280, 8
          %s282 = scalar_lea.vmem [#allocation2], %s281
          %284 = vsyncadd %s279, 0
          %s285 = smul.addr %s23, 8
          %s286 = scalar_lea.hbm %s0, %s285
          %s288 = sshll.u32 %s286, 4
          %s289 = int_to_ptr.hbm [resolvable:$true] %s288
          %s290 = sshll.u32 %s282, 4
          %s291 = int_to_ptr.vmem [resolvable:$true] %s290
          %293 = dma.hbm_to_vmem [thread:$0]  %s289, 128, %s291, %s279
        $region40: #{tpu_custom_call.1} parent=35 // pred_fallthru
          _
      $region36: #{tpu_custom_call.1} parent=5 // pred_fallthru
        _
      %p294 = scmp.le.s32.totalorder 1, %s23
      %p295 = scmp.lt.s32.totalorder %s23, 9
      %p296 = pnand %p294, %p295
      %p297 = pneg %p296
      // Predicated region
      $region41: #{tpu_custom_call.1} parent=5 // pred_check
        _
      $region42: #{tpu_custom_call.1} parent=5 // pred_check_branch
        %299 = sbr.rel (%p296) target = $region44
      $region43: #{tpu_custom_call.1} parent=5 // pred_region
        %s300 = ssub.s32 %s23, 1
        %s301 = sand.u32 %s36, 1
        %s302 = scalar_lea.sflag [#allocation3], %s301
        %s303 = sand.u32 %s36, 1
        %s304 = smul.addr %s303, 8
        %s305 = scalar_lea.vmem [#allocation2], %s304
        // Predicated region
        $region45: #{tpu_custom_call.1} parent=43 // pred_check
          %p306 = pneg %p49
        $region46: #{tpu_custom_call.1} parent=43 // pred_check_branch
          %308 = sbr.rel (%p306) target = $region48
        $region47: #{tpu_custom_call.1} parent=43 // pred_region
          %310 = dma.done %s302, 128
        $region48: #{tpu_custom_call.1} parent=43 // pred_fallthru
          _
        // Predicated region
        $region49: #{tpu_custom_call.1} parent=43 // pred_check
          %p311 = pneg %p70
        $region50: #{tpu_custom_call.1} parent=43 // pred_check_branch
          %313 = sbr.rel (%p311) target = $region52
        $region51: #{tpu_custom_call.1} parent=43 // pred_region
          %315 = dma.done [#allocation6], 128
        $region52: #{tpu_custom_call.1} parent=43 // pred_fallthru
          _
        // Predicated region
        $region53: #{tpu_custom_call.1} parent=43 // pred_check
          %p316 = pneg %p91
        $region54: #{tpu_custom_call.1} parent=43 // pred_check_branch
          %318 = sbr.rel (%p316) target = $region56
        $region55: #{tpu_custom_call.1} parent=43 // pred_region
          %320 = dma.done [#allocation6], 768
        $region56: #{tpu_custom_call.1} parent=43 // pred_fallthru
          _
        // Predicated region
        $region57: #{tpu_custom_call.1} parent=43 // pred_check
          %p321 = pneg %p112
        $region58: #{tpu_custom_call.1} parent=43 // pred_check_branch
          %323 = sbr.rel (%p321) target = $region60
        $region59: #{tpu_custom_call.1} parent=43 // pred_region
          %325 = dma.done [#allocation9], 6144
        $region60: #{tpu_custom_call.1} parent=43 // pred_fallthru
          _
        // Predicated region
        $region61: #{tpu_custom_call.1} parent=43 // pred_check
          %p326 = pneg %p154
        $region62: #{tpu_custom_call.1} parent=43 // pred_check_branch
          %328 = sbr.rel (%p326) target = $region64
        $region63: #{tpu_custom_call.1} parent=43 // pred_region
          %330 = dma.done [#allocation9], 48
        $region64: #{tpu_custom_call.1} parent=43 // pred_fallthru
          _
        %s331 = sand.u32 %s36, 1
        %s332 = scalar_lea.sflag [#allocation3], %s331
        %s333 = sand.u32 %s36, 1
        %s334 = smul.addr %s333, 8
        %s335 = scalar_lea.vmem [#allocation2], %s334
        %p336 = pneg %p49
        %p337 = pneg %p46
        %p338 = pneg %p70
        %p339 = pneg %p67
        %p340 = pneg %p91
        %p341 = pneg %p88
        %p342 = pneg %p112
        %p343 = pneg %p109
        %p344 = pneg %p133
        %p345 = pneg %p130
        %p346 = pneg %p154
        %p347 = pneg %p151
        %p348 = pneg %p180
        %p349 = pneg %p177
        %s350 = sand.u32 %s167, 1
        %s351 = scalar_lea.sflag [#allocation4], %s350
        %s352 = sand.u32 %s167, 1
        %s353 = smul.addr %s352, 8
        %s354 = scalar_lea.vmem [#allocation11], %s353
        %p355 = pneg %p201
        %p356 = pneg %p198
        %p357 = scmp.eq.s32.totalorder %s28, 0
        // Predicated region
        $region65: #{tpu_custom_call.1} parent=43 // pred_check
          %p358 = pneg %p357
        $region66: #{tpu_custom_call.1} parent=43 // pred_check_branch
          %360 = sbr.rel (%p358) target = $region68
        $region67: #{tpu_custom_call.1} parent=43 // pred_region
          %v361 = vld [vmem:[#allocation5] sm:$0xff]
          %362 = vst [vmem:[#allocation12] sm:$0xff] %v361
        $region68: #{tpu_custom_call.1} parent=43 // pred_fallthru
          _
        %v363 = vld [vmem:[%s305] sm:$0xff]
        %v364 = vld [vmem:[#allocation12] sm:$0xff]
        %v365 = vld [vmem:[#allocation7] sm:$0xff]
        %v366 = vld [vmem:[#allocation7 + $0x8] sm:$0xff]
        %v367 = vld [vmem:[#allocation7 + $0x10] sm:$0xff]
        %v368 = vld [vmem:[#allocation7 + $0x18] sm:$0xff]
        %v369 = vld [vmem:[#allocation7 + $0x20] sm:$0xff]
        %v370 = vld [vmem:[#allocation7 + $0x28] sm:$0xff]
        %v371 = vld [vmem:[%s4] sm:$0x7]
        %v373 = vperm.slane %v371, 0
        %v374 = vperm.slane %v371, 1
        %v375 = vperm.slane %v371, 2
        %vm379 = vcmask 130048
        %v381 = vsel %vm379, %v363, 0
        %383 = vmatpush.msra.mxu0 0.0
        %384 = vmatpush.msra.mxu0 0.0
        %385 = vmatpush.msra.mxu0 0.0
        %386 = vmatpush.msra.mxu0 0.0
        %387 = vmatpush.msra.mxu0 0.0
        %388 = vmatpush.msra.mxu0 0.0
        %389 = vmatpush.msra.mxu0 0.0
        %390 = vmatpush.msra.mxu0 0.0
        %391 = vmatpush.msra.mxu0 0.0
        %392 = vmatpush.msra.mxu0 0.0
        %393 = vmatpush.msra.mxu0 0.0
        %394 = vmatpush.msra.mxu0 0.0
        %395 = vmatpush.msra.mxu0 0.0
        %396 = vmatpush.msra.mxu0 0.0
        %397 = vmatpush.msra.mxu0 %v368
        %398 = vmatpush.msra.mxu0 %v365
        %399 = vmatmul.f32.gmra.mxu0 %v381
        %v400 = vpop.f32.mrf.mxu0
        %v401 = vadd.f32 %v373, %v400
        %402 = vdwg.mxu0
        %403 = vmatpush.msra.mxu0 0.0
        %404 = vmatpush.msra.mxu0 0.0
        %405 = vmatpush.msra.mxu0 0.0
        %406 = vmatpush.msra.mxu0 0.0
        %407 = vmatpush.msra.mxu0 0.0
        %408 = vmatpush.msra.mxu0 0.0
        %409 = vmatpush.msra.mxu0 0.0
        %410 = vmatpush.msra.mxu0 0.0
        %411 = vmatpush.msra.mxu0 0.0
        %412 = vmatpush.msra.mxu0 0.0
        %413 = vmatpush.msra.mxu0 0.0
        %414 = vmatpush.msra.mxu0 0.0
        %415 = vmatpush.msra.mxu0 0.0
        %416 = vmatpush.msra.mxu0 0.0
        %417 = vmatpush.msra.mxu0 %v369
        %418 = vmatpush.msra.mxu0 %v366
        %419 = vmatmul.f32.gmra.mxu0 %v381
        %v420 = vpop.f32.mrf.mxu0
        %v421 = vadd.f32 %v374, %v420
        %422 = vdwg.mxu0
        %423 = vmatpush.msra.mxu0 0.0
        %424 = vmatpush.msra.mxu0 0.0
        %425 = vmatpush.msra.mxu0 0.0
        %426 = vmatpush.msra.mxu0 0.0
        %427 = vmatpush.msra.mxu0 0.0
        %428 = vmatpush.msra.mxu0 0.0
        %429 = vmatpush.msra.mxu0 0.0
        %430 = vmatpush.msra.mxu0 0.0
        %431 = vmatpush.msra.mxu0 0.0
        %432 = vmatpush.msra.mxu0 0.0
        %433 = vmatpush.msra.mxu0 0.0
        %434 = vmatpush.msra.mxu0 0.0
        %435 = vmatpush.msra.mxu0 0.0
        %436 = vmatpush.msra.mxu0 0.0
        %437 = vmatpush.msra.mxu0 %v370
        %438 = vmatpush.msra.mxu0 %v367
        %439 = vmatmul.f32.gmra.mxu0 %v381
        %v440 = vpop.f32.mrf.mxu0
        %v441 = vadd.f32 %v375, %v440
        %442 = vdwg.mxu0
        %v443 = vld [vmem:[#allocation8] sm:$0xff]
        %v444 = vld [vmem:[#allocation8 + $0x8] sm:$0xff]
        %v445 = vld [vmem:[#allocation8 + $0x10] sm:$0xff]
        %v446 = vld [vmem:[#allocation8 + $0x18] sm:$0xff]
        %v447 = vld [vmem:[#allocation8 + $0x20] sm:$0xff]
        %v448 = vld [vmem:[#allocation8 + $0x28] sm:$0xff]
        %v449 = vld [vmem:[#allocation8 + $0x30] sm:$0xff]
        %v450 = vld [vmem:[#allocation8 + $0x38] sm:$0xff]
        %v451 = vld [vmem:[#allocation8 + $0x40] sm:$0xff]
        %v452 = vld [vmem:[#allocation8 + $0x48] sm:$0xff]
        %v453 = vld [vmem:[#allocation8 + $0x50] sm:$0xff]
        %v454 = vld [vmem:[#allocation8 + $0x58] sm:$0xff]
        %v455 = vld [vmem:[#allocation8 + $0x60] sm:$0xff]
        %v456 = vld [vmem:[#allocation8 + $0x68] sm:$0xff]
        %v457 = vld [vmem:[#allocation8 + $0x70] sm:$0xff]
        %v458 = vld [vmem:[#allocation8 + $0x78] sm:$0xff]
        %v459 = vld [vmem:[#allocation8 + $0x80] sm:$0xff]
        %v460 = vld [vmem:[#allocation8 + $0x88] sm:$0xff]
        %v461 = vld [vmem:[#allocation8 + $0x90] sm:$0xff]
        %v462 = vld [vmem:[#allocation8 + $0x98] sm:$0xff]
        %v463 = vld [vmem:[#allocation8 + $0xa0] sm:$0xff]
        %v464 = vld [vmem:[#allocation8 + $0xa8] sm:$0xff]
        %v465 = vld [vmem:[#allocation8 + $0xb0] sm:$0xff]
        %v466 = vld [vmem:[#allocation8 + $0xb8] sm:$0xff]
        %v467 = vld [vmem:[#allocation8 + $0xc0] sm:$0xff]
        %v468 = vld [vmem:[#allocation8 + $0xc8] sm:$0xff]
        %v469 = vld [vmem:[#allocation8 + $0xd0] sm:$0xff]
        %v470 = vld [vmem:[#allocation8 + $0xd8] sm:$0xff]
        %v471 = vld [vmem:[#allocation8 + $0xe0] sm:$0xff]
        %v472 = vld [vmem:[#allocation8 + $0xe8] sm:$0xff]
        %v473 = vld [vmem:[#allocation8 + $0xf0] sm:$0xff]
        %v474 = vld [vmem:[#allocation8 + $0xf8] sm:$0xff]
        %v475 = vld [vmem:[#allocation8 + $0x100] sm:$0xff]
        %v476 = vld [vmem:[#allocation8 + $0x108] sm:$0xff]
        %v477 = vld [vmem:[#allocation8 + $0x110] sm:$0xff]
        %v478 = vld [vmem:[#allocation8 + $0x118] sm:$0xff]
        %v479 = vld [vmem:[#allocation8 + $0x120] sm:$0xff]
        %v480 = vld [vmem:[#allocation8 + $0x128] sm:$0xff]
        %v481 = vld [vmem:[#allocation8 + $0x130] sm:$0xff]
        %v482 = vld [vmem:[#allocation8 + $0x138] sm:$0xff]
        %v483 = vld [vmem:[#allocation8 + $0x140] sm:$0xff]
        %v484 = vld [vmem:[#allocation8 + $0x148] sm:$0xff]
        %v485 = vld [vmem:[#allocation8 + $0x150] sm:$0xff]
        %v486 = vld [vmem:[#allocation8 + $0x158] sm:$0xff]
        %v487 = vld [vmem:[#allocation8 + $0x160] sm:$0xff]
        %v488 = vld [vmem:[#allocation8 + $0x168] sm:$0xff]
        %v489 = vld [vmem:[#allocation8 + $0x170] sm:$0xff]
        %v490 = vld [vmem:[#allocation8 + $0x178] sm:$0xff]
        %v491 = vld [vmem:[#allocation10] sm:$0x7]
        %v493 = vperm.slane %v491, 0
        %v494 = vperm.slane %v491, 1
        %v495 = vperm.slane %v491, 2
        %499 = vmatpush.msra.mxu0 %v488
        %500 = vmatpush.msra.mxu0 %v485
        %501 = vmatpush.msra.mxu0 %v482
        %502 = vmatpush.msra.mxu0 %v479
        %503 = vmatpush.msra.mxu0 %v476
        %504 = vmatpush.msra.mxu0 %v473
        %505 = vmatpush.msra.mxu0 %v470
        %506 = vmatpush.msra.mxu0 %v467
        %507 = vmatpush.msra.mxu0 %v464
        %508 = vmatpush.msra.mxu0 %v461
        %509 = vmatpush.msra.mxu0 %v458
        %510 = vmatpush.msra.mxu0 %v455
        %511 = vmatpush.msra.mxu0 %v452
        %512 = vmatpush.msra.mxu0 %v449
        %513 = vmatpush.msra.mxu0 %v446
        %514 = vmatpush.msra.mxu0 %v443
        %515 = vmatmul.f32.gmra.mxu0 %v364
        %v516 = vpop.f32.mrf.mxu0
        %v517 = vadd.f32 %v493, %v516
        %518 = vdwg.mxu0
        %519 = vmatpush.msra.mxu0 %v489
        %520 = vmatpush.msra.mxu0 %v486
        %521 = vmatpush.msra.mxu0 %v483
        %522 = vmatpush.msra.mxu0 %v480
        %523 = vmatpush.msra.mxu0 %v477
        %524 = vmatpush.msra.mxu0 %v474
        %525 = vmatpush.msra.mxu0 %v471
        %526 = vmatpush.msra.mxu0 %v468
        %527 = vmatpush.msra.mxu0 %v465
        %528 = vmatpush.msra.mxu0 %v462
        %529 = vmatpush.msra.mxu0 %v459
        %530 = vmatpush.msra.mxu0 %v456
        %531 = vmatpush.msra.mxu0 %v453
        %532 = vmatpush.msra.mxu0 %v450
        %533 = vmatpush.msra.mxu0 %v447
        %534 = vmatpush.msra.mxu0 %v444
        %535 = vmatmul.f32.gmra.mxu0 %v364
        %v536 = vpop.f32.mrf.mxu0
        %v537 = vadd.f32 %v494, %v536
        %538 = vdwg.mxu0
        %539 = vmatpush.msra.mxu0 %v490
        %540 = vmatpush.msra.mxu0 %v487
        %541 = vmatpush.msra.mxu0 %v484
        %542 = vmatpush.msra.mxu0 %v481
        %543 = vmatpush.msra.mxu0 %v478
        %544 = vmatpush.msra.mxu0 %v475
        %545 = vmatpush.msra.mxu0 %v472
        %546 = vmatpush.msra.mxu0 %v469
        %547 = vmatpush.msra.mxu0 %v466
        %548 = vmatpush.msra.mxu0 %v463
        %549 = vmatpush.msra.mxu0 %v460
        %550 = vmatpush.msra.mxu0 %v457
        %551 = vmatpush.msra.mxu0 %v454
        %552 = vmatpush.msra.mxu0 %v451
        %553 = vmatpush.msra.mxu0 %v448
        %554 = vmatpush.msra.mxu0 %v445
        %555 = vmatmul.f32.gmra.mxu0 %v364
        %v556 = vpop.f32.mrf.mxu0
        %v557 = vadd.f32 %v495, %v556
        %558 = vdwg.mxu0
        %v559 = vadd.f32 %v401, %v517
        %v560 = vxor.u32 %v559, 2147483648
        %v561 = vmul.f32 %v560, 1.442695
        %v562 = vpow.pop %v561
        %v563 = vadd.f32 %v562, 1.0
        %v564 = vrcp.pop %v563
        %v565 = vmul.f32 %v563, %v564
        %v566 = vsub.f32 1.0, %v565
        %v567 = vmul.f32 %v564, %v566
        %v568 = vadd.f32 %v564, %v567
        %vm569 = vweird.f32 %v563
        %vm570 = vweird.f32 %v564
        %vm571 = vmor %vm569, %vm570
        %v572 = vsel %vm571, %v564, %v568
        %v573 = vand.u32 2147483647, %v563
        %vm574 = vcmp.eq.f32.partialorder %v573, 8.507059e+37
        %v575 = vand.u32 %v563, 2147483648
        %v576 = vor.u32 1.1754944e-38, %v575
        %v577 = vsel %vm574, %v576, %v572
        %v578 = vmul.f32 1.0, %v577
        %v579 = vadd.f32 %v421, %v537
        %v580 = vxor.u32 %v579, 2147483648
        %v581 = vmul.f32 %v580, 1.442695
        %v582 = vpow.pop %v581
        %v583 = vadd.f32 %v582, 1.0
        %v584 = vrcp.pop %v583
        %v585 = vmul.f32 %v583, %v584
        %v586 = vsub.f32 1.0, %v585
        %v587 = vmul.f32 %v584, %v586
        %v588 = vadd.f32 %v584, %v587
        %vm589 = vweird.f32 %v583
        %vm590 = vweird.f32 %v584
        %vm591 = vmor %vm589, %vm590
        %v592 = vsel %vm591, %v584, %v588
        %v593 = vand.u32 2147483647, %v583
        %vm594 = vcmp.eq.f32.partialorder %v593, 8.507059e+37
        %v595 = vand.u32 %v583, 2147483648
        %v596 = vor.u32 1.1754944e-38, %v595
        %v597 = vsel %vm594, %v596, %v592
        %v598 = vmul.f32 1.0, %v597
        %v599 = vmul.f32 %v578, %v557
        %v600 = vadd.f32 %v441, %v599
        %v601 = vtanh.pop %v600
        %v602 = vsub.f32 1.0, %v598
        %v603 = vmul.f32 %v602, %v601
        %v604 = vmul.f32 %v598, %v364
        %v605 = vadd.f32 %v603, %v604
        %606 = vst [vmem:[#allocation12] sm:$0xff] %v605
        %607 = vst [vmem:[%s354] sm:$0xff] %v605
        %s608 = sand.u32 %s167, 1
        %s609 = scalar_lea.sflag [#allocation4], %s608
        %s610 = sand.u32 %s167, 1
        %s611 = smul.addr %s610, 8
        %s612 = scalar_lea.vmem [#allocation11], %s611
        // Predicated region
        $region69: #{tpu_custom_call.1} parent=43 // pred_check
          %p613 = pneg %p177
        $region70: #{tpu_custom_call.1} parent=43 // pred_check_branch
          %615 = sbr.rel (%p613) target = $region72
        $region71: #{tpu_custom_call.1} parent=43 // pred_region
          %617 = vsyncadd %s609, 0
          %s618 = smul.addr %s28, 8
          %s619 = scalar_lea.hbm %s6, %s618
          %s621 = sshll.u32 %s612, 4
          %s622 = int_to_ptr.vmem [resolvable:$true] %s621
          %s623 = sshll.u32 %s619, 4
          %s624 = int_to_ptr.hbm [resolvable:$true] %s623
          %626 = dma.vmem_to_hbm [thread:$0]  %s622, 128, %s624, %s609
        $region72: #{tpu_custom_call.1} parent=43 // pred_fallthru
          _
        // Predicated region
        $region73: #{tpu_custom_call.1} parent=43 // pred_check
          %p627 = pneg %p198
        $region74: #{tpu_custom_call.1} parent=43 // pred_check_branch
          %629 = sbr.rel (%p627) target = $region76
        $region75: #{tpu_custom_call.1} parent=43 // pred_region
          %631 = vsyncadd [#allocation13], 0
          %s633 = sshll.u32 [#allocation12], 4
          %s634 = int_to_ptr.vmem [resolvable:$true] %s633
          %s635 = sshll.u32 %s7, 4
          %s636 = int_to_ptr.hbm [resolvable:$true] %s635
          %638 = dma.vmem_to_hbm [thread:$0]  %s634, 128, %s636, [#allocation13]
        $region76: #{tpu_custom_call.1} parent=43 // pred_fallthru
          _
        // Predicated region
        $region77: #{tpu_custom_call.1} parent=43 // pred_check
          %p639 = pneg %p198
        $region78: #{tpu_custom_call.1} parent=43 // pred_check_branch
          %641 = sbr.rel (%p639) target = $region80
        $region79: #{tpu_custom_call.1} parent=43 // pred_region
          %643 = dma.done [#allocation13], 128
        $region80: #{tpu_custom_call.1} parent=43 // pred_fallthru
          _
      $region44: #{tpu_custom_call.1} parent=5 // pred_fallthru
        _
      %p644 = scmp.le.s32.totalorder 2, %s23
      // Predicated region
      $region81: #{tpu_custom_call.1} parent=5 // pred_check
        %p645 = pneg %p644
      $region82: #{tpu_custom_call.1} parent=5 // pred_check_branch
        %647 = sbr.rel (%p645) target = $region84
      $region83: #{tpu_custom_call.1} parent=5 // pred_region
        %s648 = ssub.s32 %s23, 2
        // Predicated region
        $region85: #{tpu_custom_call.1} parent=83 // pred_check
          %p649 = pneg %p183
        $region86: #{tpu_custom_call.1} parent=83 // pred_check_branch
          %651 = sbr.rel (%p649) target = $region88
        $region87: #{tpu_custom_call.1} parent=83 // pred_region
          %s652 = sand.u32 %s168, 1
          %s653 = scalar_lea.sflag [#allocation4], %s652
          %s654 = sand.u32 %s168, 1
          %s655 = smul.addr %s654, 8
          %s656 = scalar_lea.vmem [#allocation11], %s655
          %658 = dma.done %s653, 128
        $region88: #{tpu_custom_call.1} parent=83 // pred_fallthru
          _
      $region84: #{tpu_custom_call.1} parent=5 // pred_fallthru
        _
    $region6: #{tpu_custom_call.1} parent=1 // loop_footer
      %s27 = sadd.s32 1, %s23
    $region7: #{tpu_custom_call.1} parent=1 // loop_footer_branch
      %22 = sbr.rel target = $region3
    $region8: #{tpu_custom_call.1} parent=1 // loop_exit
      _
    %659 = vsyncpa [#allocation3], 1
    %s660 = scalar_lea.sflag [#allocation3], 1
    %661 = vsyncpa %s660, 1
    %662 = vsyncpa [#allocation6], 1
    %663 = vsyncpa [#allocation9], 1
    %664 = vsyncpa [#allocation4], 1
    %s665 = scalar_lea.sflag [#allocation4], 1
    %666 = vsyncpa %s665, 1
    %667 = vsyncpa [#allocation13], 1

</llo_original>
